<compile_context>
chip_gen: v7x
topology: tpu7x:2x2x1
jax: 0.10.0
libtpu: 0.0.40
codegen_flags: <defaults>
</compile_context>

<pallas_src>
import jax
import jax.numpy as jnp
from jax.experimental import pallas as pl
from jax.experimental.pallas import tpu as pltpu


def _round_up(x, m):
    return ((x + m - 1) // m) * m


def _vmem_capacity_bytes():
    try:
        return int(pltpu.get_tpu_info().vmem_capacity_bytes)
    except Exception:
        return 64 * 1024 * 1024        # conservative: v7x per-TensorCore VMEM


def _clamp_vmem(need_bytes, cap_bytes):
    # Requested scoped-VMEM limit: what we need + compiler scratch headroom,
    # never below 32 MiB, never above 75% of physical VMEM.
    limit = need_bytes + (8 << 20)
    return int(min(max(limit, 32 << 20), int(cap_bytes * 0.75)))


# --------------------------------------------------------------------------
# Kernel 1: fused LSTM cell.  Grid axis 0 = gate index (i, f, g, o); each
# step streams that gate's weights and writes its pre-activation into VMEM
# scratch; the last step applies the nonlinearities and emits h1/c1.
# --------------------------------------------------------------------------
def _lstm_cell_kernel(emb_ref, ctx_ref, h0_ref, c0_ref,
                      we_ref, wc_ref, wh_ref, b_ref,
                      h1_ref, c1_ref, h1b_ref, gate_scr):
    g = pl.program_id(0)
    pre = (jnp.dot(emb_ref[...].astype(jnp.bfloat16), we_ref[...],
                   preferred_element_type=jnp.float32)
           + jnp.dot(ctx_ref[...].astype(jnp.bfloat16), wc_ref[...],
                     preferred_element_type=jnp.float32)
           + jnp.dot(h0_ref[...].astype(jnp.bfloat16), wh_ref[...],
                     preferred_element_type=jnp.float32)
           + b_ref[...])
    gate_scr[g] = pre                           # (Bp, Hp) f32 per gate

    @pl.when(g == pl.num_programs(0) - 1)
    def _():
        # Gate nonlinearities in f32 (v5e has no bf16 VPU/EUP path).
        i_g = jax.nn.sigmoid(gate_scr[0])
        f_g = jax.nn.sigmoid(gate_scr[1])
        g_g = jnp.tanh(gate_scr[2])
        o_g = jax.nn.sigmoid(gate_scr[3])
        c1 = f_g * c0_ref[...] + i_g * g_g
        h1 = o_g * jnp.tanh(c1)
        c1_ref[...] = c1
        h1_ref[...] = h1
        h1b_ref[...] = h1.astype(jnp.bfloat16)  # bf16 copy for the FC stream


# --------------------------------------------------------------------------
# Kernel 2: FC projection, vocab-tiled.  Each grid step streams one
# contiguous (Hp, TILE_V) bf16 weight tile; h1 is a tiny resident input.
# --------------------------------------------------------------------------
def _fc_kernel(h_ref, w_ref, b_ref, out_ref):
    out_ref[...] = (jnp.dot(h_ref[...], w_ref[...],
                            preferred_element_type=jnp.float32)
                    + b_ref[...])


def prepare_params(params, *, tile_v=None):
    """One-time weight preprocessing (NOT per decode step)."""
    V, E = params["embedding"].shape
    H = params["w_hh"].shape[1]
    assert params["w_ih"].shape == (4 * H, E + H)
    assert params["fc_w"].shape == (V, H)

    Ep = _round_up(E, 128)
    Hp = _round_up(H, 128)

    if tile_v is None:
        # Budget ~1/3 of VMEM for the double-buffered bf16 FC-weight stream:
        #   2 buffers * Hp * TILE_V * 2 bytes <= cap // 3
        cap = _vmem_capacity_bytes()
        tile_v = (cap // 3) // (4 * Hp)
        tile_v = max(512, min(8192, tile_v))
    tile_v = max(128, (tile_v // 128) * 128)
    TILE_V = min(tile_v, _round_up(V, 128))
    Vp = _round_up(V, TILE_V)
    n_v = Vp // TILE_V

    f32 = jnp.float32
    w_ih = params["w_ih"].astype(f32)                 # (4H, E+H)
    w_hh = params["w_hh"].astype(f32)                 # (4H, H)
    bias = (params["b_ih"] + params["b_hh"]).astype(f32)

    # Per-gate transposed weight tiles (contiguous per gate), padded.
    w_emb = jnp.zeros((4, Ep, Hp), f32)
    w_ctx = jnp.zeros((4, Hp, Hp), f32)
    w_hid = jnp.zeros((4, Hp, Hp), f32)
    b_g = jnp.zeros((4, 1, Hp), f32)
    for g in range(4):                                # PyTorch order: i, f, g, o
        wg_ih = w_ih[g * H:(g + 1) * H, :]            # (H, E+H)
        wg_hh = w_hh[g * H:(g + 1) * H, :]            # (H, H)
        w_emb = w_emb.at[g, :E, :H].set(wg_ih[:, :E].T)
        w_ctx = w_ctx.at[g, :H, :H].set(wg_ih[:, E:].T)
        w_hid = w_hid.at[g, :H, :H].set(wg_hh.T)
        b_g = b_g.at[g, 0, :H].set(bias[g * H:(g + 1) * H])

    # FC weight pre-tiled to (n_v, Hp, TILE_V): one contiguous HBM burst/tile.
    fcw = jnp.zeros((Hp, Vp), f32).at[:H, :V].set(params["fc_w"].astype(f32).T)
    fcw_tiles = fcw.reshape(Hp, n_v, TILE_V).transpose(1, 0, 2)
    fcb = jnp.zeros((1, Vp), f32).at[0, :V].set(params["fc_b"].astype(f32))

    return {
        "embedding": params["embedding"].astype(f32),
        "w_emb": w_emb.astype(jnp.bfloat16),          # (4, Ep, Hp)
        "w_ctx": w_ctx.astype(jnp.bfloat16),          # (4, Hp, Hp)
        "w_hid": w_hid.astype(jnp.bfloat16),          # (4, Hp, Hp)
        "b_gates": b_g,                               # (4, 1, Hp) f32
        "fc_w_tiles": fcw_tiles.astype(jnp.bfloat16), # (n_v, Hp, TILE_V)
        "fc_b": fcb,                                  # (1, Vp) f32
        "dims": {"E": E, "H": H, "V": V, "Ep": Ep, "Hp": Hp,
                 "Vp": Vp, "TILE_V": TILE_V, "n_v": n_v},
    }


def decoder_step_pallas(emb, context, h0, c0, prep):
    """emb:(B,E) context:(B,H) h0,c0:(B,H) -> logits (B,V), h1 (B,H), c1 (B,H)."""
    d = prep["dims"]
    E, H, V = d["E"], d["H"], d["V"]
    Ep, Hp, Vp = d["Ep"], d["Hp"], d["Vp"]
    TILE_V, n_v = d["TILE_V"], d["n_v"]
    B = emb.shape[0]
    Bp = _round_up(max(B, 8), 8)                      # full sublane

    emb_p = jnp.pad(emb, ((0, Bp - B), (0, Ep - E)))
    ctx_p = jnp.pad(context, ((0, Bp - B), (0, Hp - H)))
    h0_p = jnp.pad(h0, ((0, Bp - B), (0, Hp - H)))
    c0_p = jnp.pad(c0, ((0, Bp - B), (0, Hp - H)))

    cap = _vmem_capacity_bytes()

    # ---- LSTM cell: per-gate streamed weights, scratch-carried gates ----
    lstm_need = (2 * (Ep + 2 * Hp) * Hp * 2       # double-buffered gate weights
                 + 4 * Bp * Hp * 4                # gate pre-activation scratch
                 + 2 * Bp * (Ep + 3 * Hp) * 4     # activation inputs
                 + 6 * Bp * Hp * 4)               # outputs
    h1_p, c1_p, h1_b16 = pl.pallas_call(
        _lstm_cell_kernel,
        grid=(4,),
        in_specs=[
            pl.BlockSpec((Bp, Ep), lambda g: (0, 0)),          # emb (resident)
            pl.BlockSpec((Bp, Hp), lambda g: (0, 0)),          # context
            pl.BlockSpec((Bp, Hp), lambda g: (0, 0)),          # h0
            pl.BlockSpec((Bp, Hp), lambda g: (0, 0)),          # c0
            pl.BlockSpec((None, Ep, Hp), lambda g: (g, 0, 0)), # W_emb[g]
            pl.BlockSpec((None, Hp, Hp), lambda g: (g, 0, 0)), # W_ctx[g]
            pl.BlockSpec((None, Hp, Hp), lambda g: (g, 0, 0)), # W_hid[g]
            pl.BlockSpec((None, 1, Hp), lambda g: (g, 0, 0)),  # fused bias[g]
        ],
        out_specs=(
            pl.BlockSpec((Bp, Hp), lambda g: (0, 0)),          # h1 (f32)
            pl.BlockSpec((Bp, Hp), lambda g: (0, 0)),          # c1 (f32)
            pl.BlockSpec((Bp, Hp), lambda g: (0, 0)),          # h1 (bf16)
        ),
        out_shape=(
            jax.ShapeDtypeStruct((Bp, Hp), jnp.float32),
            jax.ShapeDtypeStruct((Bp, Hp), jnp.float32),
            jax.ShapeDtypeStruct((Bp, Hp), jnp.bfloat16),
        ),
        scratch_shapes=[pltpu.VMEM((4, Bp, Hp), jnp.float32)],
        compiler_params=pltpu.CompilerParams(
            # Gate axis carries the scratch -> must stay sequential.
            dimension_semantics=("arbitrary",),
            vmem_limit_bytes=_clamp_vmem(lstm_need, cap),
        ),
    )(emb_p, ctx_p, h0_p, c0_p,
      prep["w_emb"], prep["w_ctx"], prep["w_hid"], prep["b_gates"])

    # ---- FC projection: vocab-tiled streamed weight, no cross-step deps ----
    # TODO(synk): sweep pipeline_mode=pl.Buffered(3) on the weight spec once a
    # target chip is fixed (low single-digit % upside on the DMA bubbles).
    fc_need = (2 * Hp * TILE_V * 2                # double-buffered bf16 weight
               + 2 * Bp * TILE_V * 4              # double-buffered logits out
               + 2 * TILE_V * 4                   # bias tiles
               + 2 * Bp * Hp * 2)                 # resident h1 (bf16)
    logits_p = pl.pallas_call(
        _fc_kernel,
        grid=(n_v,),
        in_specs=[
            pl.BlockSpec((Bp, Hp), lambda j: (0, 0)),              # h1 (bf16)
            pl.BlockSpec((None, Hp, TILE_V), lambda j: (j, 0, 0)), # FC W tile
            pl.BlockSpec((1, TILE_V), lambda j: (0, j)),           # FC bias
        ],
        out_specs=pl.BlockSpec((Bp, TILE_V), lambda j: (0, j)),
        out_shape=jax.ShapeDtypeStruct((Bp, Vp), jnp.float32),
        compiler_params=pltpu.CompilerParams(
            # Purely HBM-stream-bound: vocab tiles are independent, so both
            # v7x TensorCores can each stream half of them.
            dimension_semantics=("parallel",),
            vmem_limit_bytes=_clamp_vmem(fc_need, cap),
        ),
    )(h1_b16, prep["fc_w_tiles"], prep["fc_b"])

    return logits_p[:B, :V], h1_p[:B, :H], c1_p[:B, :H]


def decoder_forward(input_token, hidden, context, prep):
    """Mirrors Decoder.forward.

    input_token: (B,) or (B,1) int32 token ids
    hidden: (h0, c0), each (1, B, H)   (PyTorch LSTM convention)
    context: (B, H) or (H,)
    returns: (output (B, 1, V), (h1 (1,B,H), c1 (1,B,H)))
    """
    token_ids = input_token[:, 0] if input_token.ndim == 2 else input_token
    # Embedding gather is data-dependent -> stays in JAX glue.
    emb = jnp.take(prep["embedding"], token_ids, axis=0)
    if context.ndim == 1:
        context = context[None, :]
    h0, c0 = hidden
    logits, h1, c1 = decoder_step_pallas(
        emb.astype(jnp.float32),
        context.astype(jnp.float32),
        h0[0].astype(jnp.float32),
        c0[0].astype(jnp.float32),
        prep,
    )
    return logits[:, None, :], (h1[None, :, :], c1[None, :, :])


def init_params(key, vocab_size, hidden_size, embedding_dim):
    ks = jax.random.split(key, 7)
    E, H, V = embedding_dim, hidden_size, vocab_size
    s = 0.1
    return {
        "embedding": s * jax.random.normal(ks[0], (V, E), jnp.float32),
        "w_ih": s * jax.random.normal(ks[1], (4 * H, E + H), jnp.float32),
        "w_hh": s * jax.random.normal(ks[2], (4 * H, H), jnp.float32),
        "b_ih": s * jax.random.normal(ks[3], (4 * H,), jnp.float32),
        "b_hh": s * jax.random.normal(ks[4], (4 * H,), jnp.float32),
        "fc_w": s * jax.random.normal(ks[5], (V, H), jnp.float32),
        "fc_b": s * jax.random.normal(ks[6], (V,), jnp.float32),
    }


def _reference_forward(input_token, hidden, context, params):
    # Pure-JAX f32 reference of the same math, for correctness check.
    if input_token.ndim == 1:
        input_token = input_token[:, None]
    emb = jnp.take(params["embedding"], input_token, axis=0)     # (B,1,E)
    ctx = context[:, None, :]                                    # (B,1,H)
    x = jnp.concatenate([emb, ctx], axis=2)[:, 0, :]             # (B,E+H)
    h0, c0 = hidden[0][0], hidden[1][0]
    gates = (x @ params["w_ih"].T + params["b_ih"]
             + h0 @ params["w_hh"].T + params["b_hh"])
    H = h0.shape[-1]
    i, f, g, o = (gates[:, 0:H], gates[:, H:2 * H],
                  gates[:, 2 * H:3 * H], gates[:, 3 * H:])
    c1 = jax.nn.sigmoid(f) * c0 + jax.nn.sigmoid(i) * jnp.tanh(g)
    h1 = jax.nn.sigmoid(o) * jnp.tanh(c1)
    logits = h1 @ params["fc_w"].T + params["fc_b"]
    return logits[:, None, :], (h1[None], c1[None])


def _run_case(key, vocab_size, hidden_size, embedding_dim, batch, tile_v=None):
    pkey, tkey, hkey, ckey, xkey = jax.random.split(key, 5)
    params = init_params(pkey, vocab_size, hidden_size, embedding_dim)
    prep = prepare_params(params, tile_v=tile_v)   # one-time weight prep

    input_token = jax.random.randint(tkey, (batch,), 0, vocab_size, dtype=jnp.int32)
    h0 = 0.1 * jax.random.normal(hkey, (1, batch, hidden_size), jnp.float32)
    c0 = 0.1 * jax.random.normal(ckey, (1, batch, hidden_size), jnp.float32)
    context = 0.1 * jax.random.normal(xkey, (batch, hidden_size), jnp.float32)

    out, (h1, c1) = decoder_forward(input_token, (h0, c0), context, prep)
    out = jax.block_until_ready(out)
    h1 = jax.block_until_ready(h1)
    c1 = jax.block_until_ready(c1)

    ref_out, (ref_h1, ref_c1) = _reference_forward(input_token, (h0, c0), context, params)
    assert out.shape == (batch, 1, vocab_size)
    assert h1.shape == (1, batch, hidden_size)
    assert c1.shape == (1, batch, hidden_size)
    # bf16 weights / bf16 matmul inputs -> loosened tolerance vs f32 reference.
    assert jnp.allclose(out, ref_out, atol=2e-2), float(jnp.max(jnp.abs(out - ref_out)))
    assert jnp.allclose(h1, ref_h1, atol=2e-2), float(jnp.max(jnp.abs(h1 - ref_h1)))
    assert jnp.allclose(c1, ref_c1, atol=2e-2), float(jnp.max(jnp.abs(c1 - ref_c1)))


if __name__ == "__main__":
    key = jax.random.PRNGKey(0)
    k1, k2 = jax.random.split(key)

    # Small config (module defaults for the demo).
    _run_case(k1, vocab_size=32, hidden_size=32, embedding_dim=16, batch=2)
    # Multi-tile vocab config (n_v > 1) to exercise the streamed FC path and
    # the "parallel" vocab axis.
    _run_case(k2, vocab_size=512, hidden_size=64, embedding_dim=48, batch=3,
              tile_v=128)

    print("KERNEL_OK")
</pallas_src>

<mosaic_0001>
module attributes {stable_mosaic.version = 11 : i64} {
  func.func @_lstm_cell_kernel(%arg0: i32, %arg1: memref<8x128xf32, #tpu.memory_space<vmem>>, %arg2: memref<8x128xf32, #tpu.memory_space<vmem>>, %arg3: memref<8x128xf32, #tpu.memory_space<vmem>>, %arg4: memref<8x128xf32, #tpu.memory_space<vmem>>, %arg5: memref<1x128x128xbf16, #tpu.memory_space<vmem>>, %arg6: memref<1x128x128xbf16, #tpu.memory_space<vmem>>, %arg7: memref<1x128x128xbf16, #tpu.memory_space<vmem>>, %arg8: memref<1x1x128xf32, #tpu.memory_space<vmem>>, %arg9: memref<8x128xf32, #tpu.memory_space<vmem>>, %arg10: memref<8x128xf32, #tpu.memory_space<vmem>>, %arg11: memref<8x128xbf16, #tpu.memory_space<vmem>>, %arg12: memref<4x8x128xf32, #tpu.memory_space<vmem>>) attributes {dimension_semantics = [#tpu.dimension_semantics<arbitrary>], iteration_bounds = array<i64: 4>, scalar_prefetch = 0 : i64, scratch_operands = 1 : i64, tpu.core_type = #tpu.core_type<tc>, window_params = [{pipeline_mode = #tpu.pipeline_mode<synchronous>, transform_indices = @transform_0, window_bounds = array<i64: 8, 128>}, {pipeline_mode = #tpu.pipeline_mode<synchronous>, transform_indices = @transform_1, window_bounds = array<i64: 8, 128>}, {pipeline_mode = #tpu.pipeline_mode<synchronous>, transform_indices = @transform_2, window_bounds = array<i64: 8, 128>}, {pipeline_mode = #tpu.pipeline_mode<synchronous>, transform_indices = @transform_3, window_bounds = array<i64: 8, 128>}, {transform_indices = @transform_4, window_bounds = array<i64: 1, 128, 128>}, {transform_indices = @transform_5, window_bounds = array<i64: 1, 128, 128>}, {transform_indices = @transform_6, window_bounds = array<i64: 1, 128, 128>}, {transform_indices = @transform_7, window_bounds = array<i64: 1, 1, 128>}, {pipeline_mode = #tpu.pipeline_mode<synchronous>, transform_indices = @transform_8, window_bounds = array<i64: 8, 128>}, {pipeline_mode = #tpu.pipeline_mode<synchronous>, transform_indices = @transform_9, window_bounds = array<i64: 8, 128>}, {pipeline_mode = #tpu.pipeline_mode<synchronous>, transform_indices = @transform_10, window_bounds = array<i64: 8, 128>}]} {
    %c0 = arith.constant 0 : index
    %c0_0 = arith.constant 0 : index
    %0 = vector.load %arg1[%c0, %c0_0] : memref<8x128xf32, #tpu.memory_space<vmem>>, vector<8x128xf32>
    %1 = arith.truncf %0 : vector<8x128xf32> to vector<8x128xbf16>
    %c0_1 = arith.constant 0 : index
    %c0_2 = arith.constant 0 : index
    %c0_3 = arith.constant 0 : index
    %2 = vector.load %arg5[%c0_1, %c0_2, %c0_3] : memref<1x128x128xbf16, #tpu.memory_space<vmem>>, vector<1x128x128xbf16>
    %3 = vector.shape_cast %2 : vector<1x128x128xbf16> to vector<128x128xbf16>
    %cst = arith.constant dense<0.000000e+00> : vector<8x128xf32>
    %4 = tpu.matmul %1, %3, %cst {dimension_numbers = #tpu.dot_dimension_numbers<[1], [0], [0], [1], [0, 0, 1, 1], [], []>} : vector<8x128xbf16>, vector<128x128xbf16>, vector<8x128xf32> -> vector<8x128xf32>
    %c0_4 = arith.constant 0 : index
    %c0_5 = arith.constant 0 : index
    %5 = vector.load %arg2[%c0_4, %c0_5] : memref<8x128xf32, #tpu.memory_space<vmem>>, vector<8x128xf32>
    %6 = arith.truncf %5 : vector<8x128xf32> to vector<8x128xbf16>
    %c0_6 = arith.constant 0 : index
    %c0_7 = arith.constant 0 : index
    %c0_8 = arith.constant 0 : index
    %7 = vector.load %arg6[%c0_6, %c0_7, %c0_8] : memref<1x128x128xbf16, #tpu.memory_space<vmem>>, vector<1x128x128xbf16>
    %8 = vector.shape_cast %7 : vector<1x128x128xbf16> to vector<128x128xbf16>
    %cst_9 = arith.constant dense<0.000000e+00> : vector<8x128xf32>
    %9 = tpu.matmul %6, %8, %cst_9 {dimension_numbers = #tpu.dot_dimension_numbers<[1], [0], [0], [1], [0, 0, 1, 1], [], []>} : vector<8x128xbf16>, vector<128x128xbf16>, vector<8x128xf32> -> vector<8x128xf32>
    %10 = arith.addf %4, %9 : vector<8x128xf32>
    %c0_10 = arith.constant 0 : index
    %c0_11 = arith.constant 0 : index
    %11 = vector.load %arg3[%c0_10, %c0_11] : memref<8x128xf32, #tpu.memory_space<vmem>>, vector<8x128xf32>
    %12 = arith.truncf %11 : vector<8x128xf32> to vector<8x128xbf16>
    %c0_12 = arith.constant 0 : index
    %c0_13 = arith.constant 0 : index
    %c0_14 = arith.constant 0 : index
    %13 = vector.load %arg7[%c0_12, %c0_13, %c0_14] : memref<1x128x128xbf16, #tpu.memory_space<vmem>>, vector<1x128x128xbf16>
    %14 = vector.shape_cast %13 : vector<1x128x128xbf16> to vector<128x128xbf16>
    %cst_15 = arith.constant dense<0.000000e+00> : vector<8x128xf32>
    %15 = tpu.matmul %12, %14, %cst_15 {dimension_numbers = #tpu.dot_dimension_numbers<[1], [0], [0], [1], [0, 0, 1, 1], [], []>} : vector<8x128xbf16>, vector<128x128xbf16>, vector<8x128xf32> -> vector<8x128xf32>
    %16 = arith.addf %10, %15 : vector<8x128xf32>
    %c0_16 = arith.constant 0 : index
    %c0_17 = arith.constant 0 : index
    %c0_18 = arith.constant 0 : index
    %17 = vector.load %arg8[%c0_16, %c0_17, %c0_18] : memref<1x1x128xf32, #tpu.memory_space<vmem>>, vector<1x1x128xf32>
    %18 = vector.shape_cast %17 : vector<1x1x128xf32> to vector<1x128xf32>
    %19 = vector.broadcast %18 : vector<1x128xf32> to vector<8x128xf32>
    %20 = arith.addf %16, %19 : vector<8x128xf32>
    %21 = arith.index_cast %arg0 : i32 to index
    %c0_19 = arith.constant 0 : index
    %c0_20 = arith.constant 0 : index
    %22 = vector.load %arg12[%21, %c0_19, %c0_20] : memref<4x8x128xf32, #tpu.memory_space<vmem>>, vector<1x8x128xf32>
    %23 = vector.shape_cast %22 : vector<1x8x128xf32> to vector<8x128xf32>
    %24 = vector.shape_cast %20 : vector<8x128xf32> to vector<1x8x128xf32>
    tpu.vector_store %arg12[%21, %c0_19, %c0_20], %24 {strides = array<i32>} : memref<4x8x128xf32, #tpu.memory_space<vmem>>, vector<1x8x128xf32>,
    %c3_i32 = arith.constant 3 : i32
    %25 = arith.cmpi eq, %arg0, %c3_i32 : i32
    %26 = arith.extui %25 : i1 to i32
    %c0_i32 = arith.constant 0 : i32
    %27 = arith.cmpi ne, %26, %c0_i32 : i32
    scf.if %27 {
      %c0_21 = arith.constant 0 : index
      %c0_22 = arith.constant 0 : index
      %c0_23 = arith.constant 0 : index
      %28 = vector.load %arg12[%c0_21, %c0_22, %c0_23] : memref<4x8x128xf32, #tpu.memory_space<vmem>>, vector<1x8x128xf32>
      %29 = vector.shape_cast %28 : vector<1x8x128xf32> to vector<8x128xf32>
      %30 = arith.negf %29 : vector<8x128xf32>
      %31 = math.exp %30 : vector<8x128xf32>
      %cst_24 = arith.constant 1.000000e+00 : f32
      %32 = vector.broadcast %cst_24 : f32 to vector<8x128xf32>
      %33 = arith.addf %32, %31 : vector<8x128xf32>
      %34 = arith.divf %32, %33 : vector<8x128xf32>
      %c1 = arith.constant 1 : index
      %c0_25 = arith.constant 0 : index
      %c0_26 = arith.constant 0 : index
      %35 = vector.load %arg12[%c1, %c0_25, %c0_26] : memref<4x8x128xf32, #tpu.memory_space<vmem>>, vector<1x8x128xf32>
      %36 = vector.shape_cast %35 : vector<1x8x128xf32> to vector<8x128xf32>
      %37 = arith.negf %36 : vector<8x128xf32>
      %38 = math.exp %37 : vector<8x128xf32>
      %cst_27 = arith.constant 1.000000e+00 : f32
      %39 = vector.broadcast %cst_27 : f32 to vector<8x128xf32>
      %40 = arith.addf %39, %38 : vector<8x128xf32>
      %41 = arith.divf %39, %40 : vector<8x128xf32>
      %c2 = arith.constant 2 : index
      %c0_28 = arith.constant 0 : index
      %c0_29 = arith.constant 0 : index
      %42 = vector.load %arg12[%c2, %c0_28, %c0_29] : memref<4x8x128xf32, #tpu.memory_space<vmem>>, vector<1x8x128xf32>
      %43 = vector.shape_cast %42 : vector<1x8x128xf32> to vector<8x128xf32>
      %44 = math.tanh %43 : vector<8x128xf32>
      %c3 = arith.constant 3 : index
      %c0_30 = arith.constant 0 : index
      %c0_31 = arith.constant 0 : index
      %45 = vector.load %arg12[%c3, %c0_30, %c0_31] : memref<4x8x128xf32, #tpu.memory_space<vmem>>, vector<1x8x128xf32>
      %46 = vector.shape_cast %45 : vector<1x8x128xf32> to vector<8x128xf32>
      %47 = arith.negf %46 : vector<8x128xf32>
      %48 = math.exp %47 : vector<8x128xf32>
      %cst_32 = arith.constant 1.000000e+00 : f32
      %49 = vector.broadcast %cst_32 : f32 to vector<8x128xf32>
      %50 = arith.addf %49, %48 : vector<8x128xf32>
      %51 = arith.divf %49, %50 : vector<8x128xf32>
      %c0_33 = arith.constant 0 : index
      %c0_34 = arith.constant 0 : index
      %52 = vector.load %arg4[%c0_33, %c0_34] : memref<8x128xf32, #tpu.memory_space<vmem>>, vector<8x128xf32>
      %53 = arith.mulf %41, %52 : vector<8x128xf32>
      %54 = arith.mulf %34, %44 : vector<8x128xf32>
      %55 = arith.addf %53, %54 : vector<8x128xf32>
      %56 = math.tanh %55 : vector<8x128xf32>
      %57 = arith.mulf %51, %56 : vector<8x128xf32>
      %c0_35 = arith.constant 0 : index
      %c0_36 = arith.constant 0 : index
      %58 = vector.load %arg10[%c0_35, %c0_36] : memref<8x128xf32, #tpu.memory_space<vmem>>, vector<8x128xf32>
      tpu.vector_store %arg10[%c0_35, %c0_36], %55 {strides = array<i32>} : memref<8x128xf32, #tpu.memory_space<vmem>>, vector<8x128xf32>,
      %c0_37 = arith.constant 0 : index
      %c0_38 = arith.constant 0 : index
      %59 = vector.load %arg9[%c0_37, %c0_38] : memref<8x128xf32, #tpu.memory_space<vmem>>, vector<8x128xf32>
      tpu.vector_store %arg9[%c0_37, %c0_38], %57 {strides = array<i32>} : memref<8x128xf32, #tpu.memory_space<vmem>>, vector<8x128xf32>,
      %60 = arith.truncf %57 : vector<8x128xf32> to vector<8x128xbf16>
      %c0_39 = arith.constant 0 : index
      %c0_40 = arith.constant 0 : index
      %61 = vector.load %arg11[%c0_39, %c0_40] : memref<8x128xbf16, #tpu.memory_space<vmem>>, vector<8x128xbf16>
      tpu.vector_store %arg11[%c0_39, %c0_40], %60 {strides = array<i32>} : memref<8x128xbf16, #tpu.memory_space<vmem>>, vector<8x128xbf16>,
    } else {
    }
    return
  }
  func.func @transform_0(%arg0: i32) -> (i32, i32) {
    %c0_i32 = arith.constant 0 : i32
    %c0_i32_0 = arith.constant 0 : i32
    %c0_i32_1 = arith.constant 0 : i32
    return %c0_i32, %c0_i32_0 : i32, i32
  }
  func.func @transform_1(%arg0: i32) -> (i32, i32) {
    %c0_i32 = arith.constant 0 : i32
    %c0_i32_0 = arith.constant 0 : i32
    %c0_i32_1 = arith.constant 0 : i32
    return %c0_i32, %c0_i32_0 : i32, i32
  }
  func.func @transform_2(%arg0: i32) -> (i32, i32) {
    %c0_i32 = arith.constant 0 : i32
    %c0_i32_0 = arith.constant 0 : i32
    %c0_i32_1 = arith.constant 0 : i32
    return %c0_i32, %c0_i32_0 : i32, i32
  }
  func.func @transform_3(%arg0: i32) -> (i32, i32) {
    %c0_i32 = arith.constant 0 : i32
    %c0_i32_0 = arith.constant 0 : i32
    %c0_i32_1 = arith.constant 0 : i32
    return %c0_i32, %c0_i32_0 : i32, i32
  }
  func.func @transform_4(%arg0: i32) -> (i32, i32, i32) {
    %c0_i32 = arith.constant 0 : i32
    %c0_i32_0 = arith.constant 0 : i32
    %c0_i32_1 = arith.constant 0 : i32
    return %arg0, %c0_i32, %c0_i32_0 : i32, i32, i32
  }
  func.func @transform_5(%arg0: i32) -> (i32, i32, i32) {
    %c0_i32 = arith.constant 0 : i32
    %c0_i32_0 = arith.constant 0 : i32
    %c0_i32_1 = arith.constant 0 : i32
    return %arg0, %c0_i32, %c0_i32_0 : i32, i32, i32
  }
  func.func @transform_6(%arg0: i32) -> (i32, i32, i32) {
    %c0_i32 = arith.constant 0 : i32
    %c0_i32_0 = arith.constant 0 : i32
    %c0_i32_1 = arith.constant 0 : i32
    return %arg0, %c0_i32, %c0_i32_0 : i32, i32, i32
  }
  func.func @transform_7(%arg0: i32) -> (i32, i32, i32) {
    %c0_i32 = arith.constant 0 : i32
    %c0_i32_0 = arith.constant 0 : i32
    %c0_i32_1 = arith.constant 0 : i32
    return %arg0, %c0_i32, %c0_i32_0 : i32, i32, i32
  }
  func.func @transform_8(%arg0: i32) -> (i32, i32) {
    %c0_i32 = arith.constant 0 : i32
    %c0_i32_0 = arith.constant 0 : i32
    %c0_i32_1 = arith.constant 0 : i32
    return %c0_i32, %c0_i32_0 : i32, i32
  }
  func.func @transform_9(%arg0: i32) -> (i32, i32) {
    %c0_i32 = arith.constant 0 : i32
    %c0_i32_0 = arith.constant 0 : i32
    %c0_i32_1 = arith.constant 0 : i32
    return %c0_i32, %c0_i32_0 : i32, i32
  }
  func.func @transform_10(%arg0: i32) -> (i32, i32) {
    %c0_i32 = arith.constant 0 : i32
    %c0_i32_0 = arith.constant 0 : i32
    %c0_i32_1 = arith.constant 0 : i32
    return %c0_i32, %c0_i32_0 : i32, i32
  }
}

</mosaic_0001>

<llo_original>
// kernel: tpu_custom_call.1
$region0: #{tpu_custom_call.1}
  #allocation0 [shape = 'u32[]', space=smem, size = 0x4, offset = 0x4, fixed_abs, tag = 'smem constant byte address 0x4 - core index']
  #allocation1 [shape = 'u32[144,128]{1,0:T(1,128)}', space=vmem, size = 0x12000, scoped, tag = 'internal scratch']
  #allocation2 [shape = 'f32[4,8,128]{2,1,0:T(8,128)}', space=vmem, size = 0x4000, scoped, tag = 'scratch operand']
  %s0 = inlined_call_operand.hbm [shape: f32[8,128], index: 0, kind: input, shape index: {}]
  %s1 = inlined_call_operand.hbm [shape: f32[8,128], index: 1, kind: input, shape index: {}]
  %s2 = inlined_call_operand.hbm [shape: f32[8,128], index: 2, kind: input, shape index: {}]
  %s3 = inlined_call_operand.vmem [shape: f32[8,128], index: 3, kind: input, shape index: {}]
  %s4 = inlined_call_operand.hbm [shape: bf16[4,128,128], index: 4, kind: input, shape index: {}]
  %s5 = inlined_call_operand.hbm [shape: bf16[4,128,128], index: 5, kind: input, shape index: {}]
  %s6 = inlined_call_operand.hbm [shape: bf16[4,128,128], index: 6, kind: input, shape index: {}]
  %s7 = inlined_call_operand.vmem [shape: f32[4,1,128], index: 7, kind: input, shape index: {}]
  %s8 = inlined_call_operand.hbm [shape: f32[8,128], index: 8, kind: output, shape index: {0}]
  %s9 = inlined_call_operand.hbm [shape: f32[8,128], index: 9, kind: output, shape index: {1}]
  %s10 = inlined_call_operand.hbm [shape: bf16[8,128], index: 10, kind: output, shape index: {2}]
  %11 = xla_tuple %s8, %s9, %s10
  %s12 = sld [smem:[#allocation0]]
  $region109: #{tpu_custom_call.1} parent=0
    _
  %s14 = ssub.s32 1, %s12
  %s15 = scalar_select 0, %s14, %s12
  $region1: #{tpu_custom_call.1} parent=0
    #allocation3 [shape = 'u8[4096]{0}', space=vmem, size = 0x1000, scoped, tag = 'input window, operand 0, single buffered']
    #allocation4 [shape = 's32[2]{0}', space=sflag, size = 0x8, scoped, tag = 'scoped memory for tpu_custom_call.1']
    #allocation5 [shape = 's32[2]{0}', space=sflag, size = 0x8, scoped, tag = 'scoped memory for tpu_custom_call.1']
    #allocation6 [shape = 'u8[4096]{0}', space=vmem, size = 0x1000, scoped, tag = 'input window, operand 1, single buffered']
    #allocation7 [shape = 's32[1]{0}', space=sflag, size = 0x4, scoped, tag = 'scoped memory for tpu_custom_call.1']
    #allocation8 [shape = 'u8[4096]{0}', space=vmem, size = 0x1000, scoped, tag = 'input window, operand 2, single buffered']
    #allocation9 [shape = 'u8[65536]{0}', space=vmem, size = 0x10000, scoped, tag = 'input window, operand 4']
    #allocation10 [shape = 's32[2]{0}', space=sflag, size = 0x8, scoped, tag = 'scoped memory for tpu_custom_call.1']
    #allocation11 [shape = 'u8[65536]{0}', space=vmem, size = 0x10000, scoped, tag = 'input window, operand 5']
    #allocation12 [shape = 'u8[65536]{0}', space=vmem, size = 0x10000, scoped, tag = 'input window, operand 6']
    #allocation13 [shape = 's32[2]{0}', space=sflag, size = 0x8, scoped, tag = 'scoped memory for tpu_custom_call.1']
    #allocation14 [shape = 'u8[4096]{0}', space=vmem, size = 0x1000, scoped, tag = 'output window, operand 0, single buffered']
    #allocation15 [shape = 'u8[4096]{0}', space=vmem, size = 0x1000, scoped, tag = 'output window, operand 1, single buffered']
    #allocation16 [shape = 's32[1]{0}', space=sflag, size = 0x4, scoped, tag = 'scoped memory for tpu_custom_call.1']
    #allocation17 [shape = 'u8[2048]{0}', space=vmem, size = 0x800, scoped, tag = 'output window, operand 2, single buffered']
    %16 = vsyncpa [#allocation4], 0
    %17 = vsyncpa [#allocation7], 0
    %18 = vsyncpa [#allocation10], 0
    %s19 = scalar_lea.sflag [#allocation10], 1
    %20 = vsyncpa %s19, 0
    %21 = vsyncpa [#allocation13], 0
    %s22 = scalar_lea.sflag [#allocation13], 1
    %23 = vsyncpa %s22, 0
    %24 = vsyncpa [#allocation5], 0
    %25 = vsyncpa [#allocation16], 0
    loop: start=0, step=1, limit=6
    $region2: #{tpu_custom_call.1} parent=1 // loop_pre_header
      _
    $region3: #{tpu_custom_call.1} parent=1 // loop_header
      %s27 = sphi 0, %s31
      %p28 = scmp.ge.s32.totalorder %s27, 6
      %s35 = sphi 0, %s35
      %s37 = sphi 0, %s35
      %s38 = sphi 0, %s37
      %s52 = sphi 0, %s38
      %s56 = sphi 0, %s56
      %s58 = sphi 0, %s56
      %s59 = sphi 0, %s58
      %s73 = sphi 0, %s59
      %s77 = sphi 0, %s77
      %s79 = sphi 0, %s77
      %s80 = sphi 0, %s79
      %s94 = sphi 0, %s80
      %s98 = sphi 0, %s98
      %s100 = sphi 0, %s98
      %s101 = sphi 0, %s100
      %s115 = sphi 0, %s101
      %s121 = sphi 0, %s123
      %s124 = sphi 0, %s121
      %s125 = sphi 0, %s124
      %s141 = sphi 0, %s125
      %s147 = sphi 0, %s149
      %s150 = sphi 0, %s147
      %s151 = sphi 0, %s150
      %s167 = sphi 0, %s151
      %s173 = sphi 0, %s175
      %s176 = sphi 0, %s173
      %s177 = sphi 0, %s176
      %s193 = sphi 0, %s177
      %s199 = sphi 0, %s201
      %s202 = sphi 0, %s199
      %s203 = sphi 0, %s202
      %s219 = sphi 0, %s203
      %s223 = sphi 0, %s223
      %s225 = sphi 0, %s223
      %s226 = sphi 0, %s225
      %s240 = sphi 0, %s226
      %s244 = sphi 0, %s244
      %s246 = sphi 0, %s244
      %s247 = sphi 0, %s246
      %s261 = sphi 0, %s247
      %s265 = sphi 0, %s265
      %s267 = sphi 0, %s265
      %s268 = sphi 0, %s267
      %s282 = sphi 0, %s268
    $region4: #{tpu_custom_call.1} parent=1 // loop_header_branch
      %30 = sbr.rel (%p28) target = $region8
    $region5: #{tpu_custom_call.1} parent=1 // loop_body
      %s32 = ssub.s32 %s27, 1
      %s33 = ssub.s32 %s27, 2
      %s34 = sadd.s32 %s27, 1
      %s36 = sadd.s32 %s35, 1
      %p39 = scmp.eq.s32.totalorder %s27, 3
      %p40 = scmp.ne.s32.totalorder %s35, %s37
      %p41 = scmp.eq.s32.totalorder %s27, 0
      %p42 = por %p40, %p41
      %p43 = scmp.ne.s32.totalorder %s35, %s37
      %p44 = scmp.eq.s32.totalorder %s32, 3
      %p45 = por %p43, %p44
      %p46 = scmp.ne.s32.totalorder %s37, %s38
      %p47 = scmp.eq.s32.totalorder %s32, 0
      %p48 = por %p46, %p47
      %p49 = scmp.ne.s32.totalorder %s37, %s38
      %p50 = scmp.eq.s32.totalorder %s33, 3
      %p51 = por %p49, %p50
      %p53 = scmp.ne.s32.totalorder %s38, %s52
      %p54 = scmp.eq.s32.totalorder %s33, 0
      %p55 = por %p53, %p54
      %s57 = sadd.s32 %s56, 1
      %p60 = scmp.eq.s32.totalorder %s27, 3
      %p61 = scmp.ne.s32.totalorder %s56, %s58
      %p62 = scmp.eq.s32.totalorder %s27, 0
      %p63 = por %p61, %p62
      %p64 = scmp.ne.s32.totalorder %s56, %s58
      %p65 = scmp.eq.s32.totalorder %s32, 3
      %p66 = por %p64, %p65
      %p67 = scmp.ne.s32.totalorder %s58, %s59
      %p68 = scmp.eq.s32.totalorder %s32, 0
      %p69 = por %p67, %p68
      %p70 = scmp.ne.s32.totalorder %s58, %s59
      %p71 = scmp.eq.s32.totalorder %s33, 3
      %p72 = por %p70, %p71
      %p74 = scmp.ne.s32.totalorder %s59, %s73
      %p75 = scmp.eq.s32.totalorder %s33, 0
      %p76 = por %p74, %p75
      %s78 = sadd.s32 %s77, 1
      %p81 = scmp.eq.s32.totalorder %s27, 3
      %p82 = scmp.ne.s32.totalorder %s77, %s79
      %p83 = scmp.eq.s32.totalorder %s27, 0
      %p84 = por %p82, %p83
      %p85 = scmp.ne.s32.totalorder %s77, %s79
      %p86 = scmp.eq.s32.totalorder %s32, 3
      %p87 = por %p85, %p86
      %p88 = scmp.ne.s32.totalorder %s79, %s80
      %p89 = scmp.eq.s32.totalorder %s32, 0
      %p90 = por %p88, %p89
      %p91 = scmp.ne.s32.totalorder %s79, %s80
      %p92 = scmp.eq.s32.totalorder %s33, 3
      %p93 = por %p91, %p92
      %p95 = scmp.ne.s32.totalorder %s80, %s94
      %p96 = scmp.eq.s32.totalorder %s33, 0
      %p97 = por %p95, %p96
      %s99 = sadd.s32 %s98, 1
      %p102 = scmp.eq.s32.totalorder %s27, 3
      %p103 = scmp.ne.s32.totalorder %s98, %s100
      %p104 = scmp.eq.s32.totalorder %s27, 0
      %p105 = por %p103, %p104
      %p106 = scmp.ne.s32.totalorder %s98, %s100
      %p107 = scmp.eq.s32.totalorder %s32, 3
      %p108 = por %p106, %p107
      %p109 = scmp.ne.s32.totalorder %s100, %s101
      %p110 = scmp.eq.s32.totalorder %s32, 0
      %p111 = por %p109, %p110
      %p112 = scmp.ne.s32.totalorder %s100, %s101
      %p113 = scmp.eq.s32.totalorder %s33, 3
      %p114 = por %p112, %p113
      %p116 = scmp.ne.s32.totalorder %s101, %s115
      %p117 = scmp.eq.s32.totalorder %s33, 0
      %p118 = por %p116, %p117
      %s119 = ssub.s32 %s27, %s34
      %p120 = scmp.eq.s32.totalorder %s119, 0
      %s122 = sadd.s32 %s121, 1
      %s123 = scalar_select %p120, %s121, %s122
      %p126 = pneg %p120
      %p127 = scmp.eq.s32.totalorder %s27, 3
      %p128 = por %p126, %p127
      %p129 = scmp.ne.s32.totalorder %s121, %s124
      %p130 = scmp.eq.s32.totalorder %s27, 0
      %p131 = por %p129, %p130
      %p132 = scmp.ne.s32.totalorder %s121, %s124
      %p133 = scmp.eq.s32.totalorder %s32, 3
      %p134 = por %p132, %p133
      %p135 = scmp.ne.s32.totalorder %s124, %s125
      %p136 = scmp.eq.s32.totalorder %s32, 0
      %p137 = por %p135, %p136
      %p138 = scmp.ne.s32.totalorder %s124, %s125
      %p139 = scmp.eq.s32.totalorder %s33, 3
      %p140 = por %p138, %p139
      %p142 = scmp.ne.s32.totalorder %s125, %s141
      %p143 = scmp.eq.s32.totalorder %s33, 0
      %p144 = por %p142, %p143
      %s145 = ssub.s32 %s27, %s34
      %p146 = scmp.eq.s32.totalorder %s145, 0
      %s148 = sadd.s32 %s147, 1
      %s149 = scalar_select %p146, %s147, %s148
      %p152 = pneg %p146
      %p153 = scmp.eq.s32.totalorder %s27, 3
      %p154 = por %p152, %p153
      %p155 = scmp.ne.s32.totalorder %s147, %s150
      %p156 = scmp.eq.s32.totalorder %s27, 0
      %p157 = por %p155, %p156
      %p158 = scmp.ne.s32.totalorder %s147, %s150
      %p159 = scmp.eq.s32.totalorder %s32, 3
      %p160 = por %p158, %p159
      %p161 = scmp.ne.s32.totalorder %s150, %s151
      %p162 = scmp.eq.s32.totalorder %s32, 0
      %p163 = por %p161, %p162
      %p164 = scmp.ne.s32.totalorder %s150, %s151
      %p165 = scmp.eq.s32.totalorder %s33, 3
      %p166 = por %p164, %p165
      %p168 = scmp.ne.s32.totalorder %s151, %s167
      %p169 = scmp.eq.s32.totalorder %s33, 0
      %p170 = por %p168, %p169
      %s171 = ssub.s32 %s27, %s34
      %p172 = scmp.eq.s32.totalorder %s171, 0
      %s174 = sadd.s32 %s173, 1
      %s175 = scalar_select %p172, %s173, %s174
      %p178 = pneg %p172
      %p179 = scmp.eq.s32.totalorder %s27, 3
      %p180 = por %p178, %p179
      %p181 = scmp.ne.s32.totalorder %s173, %s176
      %p182 = scmp.eq.s32.totalorder %s27, 0
      %p183 = por %p181, %p182
      %p184 = scmp.ne.s32.totalorder %s173, %s176
      %p185 = scmp.eq.s32.totalorder %s32, 3
      %p186 = por %p184, %p185
      %p187 = scmp.ne.s32.totalorder %s176, %s177
      %p188 = scmp.eq.s32.totalorder %s32, 0
      %p189 = por %p187, %p188
      %p190 = scmp.ne.s32.totalorder %s176, %s177
      %p191 = scmp.eq.s32.totalorder %s33, 3
      %p192 = por %p190, %p191
      %p194 = scmp.ne.s32.totalorder %s177, %s193
      %p195 = scmp.eq.s32.totalorder %s33, 0
      %p196 = por %p194, %p195
      %s197 = ssub.s32 %s27, %s34
      %p198 = scmp.eq.s32.totalorder %s197, 0
      %s200 = sadd.s32 %s199, 1
      %s201 = scalar_select %p198, %s199, %s200
      %p204 = pneg %p198
      %p205 = scmp.eq.s32.totalorder %s27, 3
      %p206 = por %p204, %p205
      %p207 = scmp.ne.s32.totalorder %s199, %s202
      %p208 = scmp.eq.s32.totalorder %s27, 0
      %p209 = por %p207, %p208
      %p210 = scmp.ne.s32.totalorder %s199, %s202
      %p211 = scmp.eq.s32.totalorder %s32, 3
      %p212 = por %p210, %p211
      %p213 = scmp.ne.s32.totalorder %s202, %s203
      %p214 = scmp.eq.s32.totalorder %s32, 0
      %p215 = por %p213, %p214
      %p216 = scmp.ne.s32.totalorder %s202, %s203
      %p217 = scmp.eq.s32.totalorder %s33, 3
      %p218 = por %p216, %p217
      %p220 = scmp.ne.s32.totalorder %s203, %s219
      %p221 = scmp.eq.s32.totalorder %s33, 0
      %p222 = por %p220, %p221
      %s224 = sadd.s32 %s223, 1
      %p227 = scmp.eq.s32.totalorder %s27, 3
      %p228 = scmp.ne.s32.totalorder %s223, %s225
      %p229 = scmp.eq.s32.totalorder %s27, 0
      %p230 = por %p228, %p229
      %p231 = scmp.ne.s32.totalorder %s223, %s225
      %p232 = scmp.eq.s32.totalorder %s32, 3
      %p233 = por %p231, %p232
      %p234 = scmp.ne.s32.totalorder %s225, %s226
      %p235 = scmp.eq.s32.totalorder %s32, 0
      %p236 = por %p234, %p235
      %p237 = scmp.ne.s32.totalorder %s225, %s226
      %p238 = scmp.eq.s32.totalorder %s33, 3
      %p239 = por %p237, %p238
      %p241 = scmp.ne.s32.totalorder %s226, %s240
      %p242 = scmp.eq.s32.totalorder %s33, 0
      %p243 = por %p241, %p242
      %s245 = sadd.s32 %s244, 1
      %p248 = scmp.eq.s32.totalorder %s27, 3
      %p249 = scmp.ne.s32.totalorder %s244, %s246
      %p250 = scmp.eq.s32.totalorder %s27, 0
      %p251 = por %p249, %p250
      %p252 = scmp.ne.s32.totalorder %s244, %s246
      %p253 = scmp.eq.s32.totalorder %s32, 3
      %p254 = por %p252, %p253
      %p255 = scmp.ne.s32.totalorder %s246, %s247
      %p256 = scmp.eq.s32.totalorder %s32, 0
      %p257 = por %p255, %p256
      %p258 = scmp.ne.s32.totalorder %s246, %s247
      %p259 = scmp.eq.s32.totalorder %s33, 3
      %p260 = por %p258, %p259
      %p262 = scmp.ne.s32.totalorder %s247, %s261
      %p263 = scmp.eq.s32.totalorder %s33, 0
      %p264 = por %p262, %p263
      %s266 = sadd.s32 %s265, 1
      %p269 = scmp.eq.s32.totalorder %s27, 3
      %p270 = scmp.ne.s32.totalorder %s265, %s267
      %p271 = scmp.eq.s32.totalorder %s27, 0
      %p272 = por %p270, %p271
      %p273 = scmp.ne.s32.totalorder %s265, %s267
      %p274 = scmp.eq.s32.totalorder %s32, 3
      %p275 = por %p273, %p274
      %p276 = scmp.ne.s32.totalorder %s267, %s268
      %p277 = scmp.eq.s32.totalorder %s32, 0
      %p278 = por %p276, %p277
      %p279 = scmp.ne.s32.totalorder %s267, %s268
      %p280 = scmp.eq.s32.totalorder %s33, 3
      %p281 = por %p279, %p280
      %p283 = scmp.ne.s32.totalorder %s268, %s282
      %p284 = scmp.eq.s32.totalorder %s33, 0
      %p285 = por %p283, %p284
      %p286 = scmp.le.s32.totalorder 1, %s27
      %p287 = scmp.lt.s32.totalorder %s27, 5
      %p288 = pnand %p286, %p287
      %p289 = pneg %p288
      // Predicated region
      $region9: #{tpu_custom_call.1} parent=5 // pred_check
        _
      $region10: #{tpu_custom_call.1} parent=5 // pred_check_branch
        %291 = sbr.rel (%p288) target = $region12
      $region11: #{tpu_custom_call.1} parent=5 // pred_region
        %s292 = ssub.s32 %s27, 1
        // Predicated region
        $region13: #{tpu_custom_call.1} parent=11 // pred_check
          %p293 = pneg %p48
        $region14: #{tpu_custom_call.1} parent=11 // pred_check_branch
          %295 = sbr.rel (%p293) target = $region16
        $region15: #{tpu_custom_call.1} parent=11 // pred_region
          %s297 = ssub.s32 128, 128
          %298 = vsyncadd [#allocation4], %s297
          %s300 = sshll.u32 [#allocation3], 4
          %s301 = int_to_ptr.vmem [resolvable:$true] %s300
          %303 = dma.hbm_to_vmem [thread:$0]  %s0, 128, %s301, [#allocation4]
        $region16: #{tpu_custom_call.1} parent=11 // pred_fallthru
          _
        // Predicated region
        $region17: #{tpu_custom_call.1} parent=11 // pred_check
          %p304 = pneg %p69
        $region18: #{tpu_custom_call.1} parent=11 // pred_check_branch
          %306 = sbr.rel (%p304) target = $region20
        $region19: #{tpu_custom_call.1} parent=11 // pred_region
          %s308 = ssub.s32 128, 128
          %309 = vsyncadd [#allocation7], %s308
          %s311 = sshll.u32 [#allocation6], 4
          %s312 = int_to_ptr.vmem [resolvable:$true] %s311
          %314 = dma.hbm_to_vmem [thread:$0]  %s1, 128, %s312, [#allocation7]
        $region20: #{tpu_custom_call.1} parent=11 // pred_fallthru
          _
        // Predicated region
        $region21: #{tpu_custom_call.1} parent=11 // pred_check
          %p315 = pneg %p90
        $region22: #{tpu_custom_call.1} parent=11 // pred_check_branch
          %317 = sbr.rel (%p315) target = $region24
        $region23: #{tpu_custom_call.1} parent=11 // pred_region
          %s319 = ssub.s32 128, 128
          %320 = vsyncadd [#allocation7], %s319
          %s322 = sshll.u32 [#allocation8], 4
          %s323 = int_to_ptr.vmem [resolvable:$true] %s322
          %325 = dma.hbm_to_vmem [thread:$0]  %s2, 128, %s323, [#allocation7]
        $region24: #{tpu_custom_call.1} parent=11 // pred_fallthru
          _
        // Predicated region
        $region25: #{tpu_custom_call.1} parent=11 // pred_check
          %p326 = pneg %p111
        $region26: #{tpu_custom_call.1} parent=11 // pred_check_branch
          %328 = sbr.rel (%p326) target = $region28
        $region27: #{tpu_custom_call.1} parent=11 // pred_region
          _
        $region28: #{tpu_custom_call.1} parent=11 // pred_fallthru
          _
      $region12: #{tpu_custom_call.1} parent=5 // pred_fallthru
        _
      %p329 = scmp.lt.s32.totalorder %s27, 4
      // Predicated region
      $region29: #{tpu_custom_call.1} parent=5 // pred_check
        %p330 = pneg %p329
      $region30: #{tpu_custom_call.1} parent=5 // pred_check_branch
        %332 = sbr.rel (%p330) target = $region32
      $region31: #{tpu_custom_call.1} parent=5 // pred_region
        // Predicated region
        $region33: #{tpu_custom_call.1} parent=31 // pred_check
          %p333 = pneg %p131
        $region34: #{tpu_custom_call.1} parent=31 // pred_check_branch
          %335 = sbr.rel (%p333) target = $region36
        $region35: #{tpu_custom_call.1} parent=31 // pred_region
          %s336 = sand.u32 %s27, 1
          %s337 = scalar_lea.sflag [#allocation10], %s336
          %s338 = sand.u32 %s121, 1
          %s339 = smul.addr %s338, 64
          %s340 = scalar_lea.vmem [#allocation9], %s339
          %s342 = ssub.s32 1024, 1024
          %343 = vsyncadd %s337, %s342
          %s344 = smul.addr %s27, 16
          %s345 = smul.addr %s344, 64
          %s346 = scalar_lea.hbm %s4, %s345
          %s347 = sshll.u32 %s340, 4
          %s348 = int_to_ptr.vmem [resolvable:$true] %s347
          %353 = dma.hbm_to_vmem [thread:$0]  %s346, 1024, %s348, %s337, 64, 64, 4
        $region36: #{tpu_custom_call.1} parent=31 // pred_fallthru
          _
        // Predicated region
        $region37: #{tpu_custom_call.1} parent=31 // pred_check
          %p354 = pneg %p157
        $region38: #{tpu_custom_call.1} parent=31 // pred_check_branch
          %356 = sbr.rel (%p354) target = $region40
        $region39: #{tpu_custom_call.1} parent=31 // pred_region
          %s357 = sand.u32 %s27, 1
          %s358 = scalar_lea.sflag [#allocation10], %s357
          %s359 = sand.u32 %s147, 1
          %s360 = smul.addr %s359, 64
          %s361 = scalar_lea.vmem [#allocation11], %s360
          %s363 = ssub.s32 1024, 1024
          %364 = vsyncadd %s358, %s363
          %s365 = smul.addr %s27, 16
          %s366 = smul.addr %s365, 64
          %s367 = scalar_lea.hbm %s5, %s366
          %s368 = sshll.u32 %s361, 4
          %s369 = int_to_ptr.vmem [resolvable:$true] %s368
          %374 = dma.hbm_to_vmem [thread:$0]  %s367, 1024, %s369, %s358, 64, 64, 4
        $region40: #{tpu_custom_call.1} parent=31 // pred_fallthru
          _
        // Predicated region
        $region41: #{tpu_custom_call.1} parent=31 // pred_check
          %p375 = pneg %p183
        $region42: #{tpu_custom_call.1} parent=31 // pred_check_branch
          %377 = sbr.rel (%p375) target = $region44
        $region43: #{tpu_custom_call.1} parent=31 // pred_region
          %s378 = sand.u32 %s173, 1
          %s379 = scalar_lea.sflag [#allocation13], %s378
          %s380 = sand.u32 %s173, 1
          %s381 = smul.addr %s380, 64
          %s382 = scalar_lea.vmem [#allocation12], %s381
          %s384 = ssub.s32 1024, 1024
          %385 = vsyncadd %s379, %s384
          %s386 = smul.addr %s27, 16
          %s387 = smul.addr %s386, 64
          %s388 = scalar_lea.hbm %s6, %s387
          %s389 = sshll.u32 %s382, 4
          %s390 = int_to_ptr.vmem [resolvable:$true] %s389
          %395 = dma.hbm_to_vmem [thread:$0]  %s388, 1024, %s390, %s379, 64, 64, 4
        $region44: #{tpu_custom_call.1} parent=31 // pred_fallthru
          _
        // Predicated region
        $region45: #{tpu_custom_call.1} parent=31 // pred_check
          %p396 = pneg %p209
        $region46: #{tpu_custom_call.1} parent=31 // pred_check_branch
          %398 = sbr.rel (%p396) target = $region48
        $region47: #{tpu_custom_call.1} parent=31 // pred_region
          %p399 = scmp.lt.s32.totalorder %s27, 3
          %s400 = scalar_select %p399, %s27, 3
          %s401 = scalar_lea.vmem %s7, %s400
        $region48: #{tpu_custom_call.1} parent=31 // pred_fallthru
          _
      $region32: #{tpu_custom_call.1} parent=5 // pred_fallthru
        _
      %p402 = scmp.le.s32.totalorder 1, %s27
      %p403 = scmp.lt.s32.totalorder %s27, 5
      %p404 = pnand %p402, %p403
      %p405 = pneg %p404
      // Predicated region
      $region49: #{tpu_custom_call.1} parent=5 // pred_check
        _
      $region50: #{tpu_custom_call.1} parent=5 // pred_check_branch
        %407 = sbr.rel (%p404) target = $region52
      $region51: #{tpu_custom_call.1} parent=5 // pred_region
        %s408 = ssub.s32 %s27, 1
        // Predicated region
        $region53: #{tpu_custom_call.1} parent=51 // pred_check
          %p409 = pneg %p48
        $region54: #{tpu_custom_call.1} parent=51 // pred_check_branch
          %411 = sbr.rel (%p409) target = $region56
        $region55: #{tpu_custom_call.1} parent=51 // pred_region
          %412 = dma.done [#allocation4], 128
        $region56: #{tpu_custom_call.1} parent=51 // pred_fallthru
          _
        // Predicated region
        $region57: #{tpu_custom_call.1} parent=51 // pred_check
          %p413 = pneg %p69
        $region58: #{tpu_custom_call.1} parent=51 // pred_check_branch
          %415 = sbr.rel (%p413) target = $region60
        $region59: #{tpu_custom_call.1} parent=51 // pred_region
          %416 = dma.done [#allocation7], 128
        $region60: #{tpu_custom_call.1} parent=51 // pred_fallthru
          _
        // Predicated region
        $region61: #{tpu_custom_call.1} parent=51 // pred_check
          %p417 = pneg %p90
        $region62: #{tpu_custom_call.1} parent=51 // pred_check_branch
          %419 = sbr.rel (%p417) target = $region64
        $region63: #{tpu_custom_call.1} parent=51 // pred_region
          %420 = dma.done [#allocation7], 128
        $region64: #{tpu_custom_call.1} parent=51 // pred_fallthru
          _
        %s421 = sand.u32 %s32, 1
        %s422 = scalar_lea.sflag [#allocation10], %s421
        %s423 = sand.u32 %s124, 1
        %s424 = smul.addr %s423, 64
        %s425 = scalar_lea.vmem [#allocation9], %s424
        // Predicated region
        $region65: #{tpu_custom_call.1} parent=51 // pred_check
          %p426 = pneg %p137
        $region66: #{tpu_custom_call.1} parent=51 // pred_check_branch
          %428 = sbr.rel (%p426) target = $region68
        $region67: #{tpu_custom_call.1} parent=51 // pred_region
          %429 = dma.done %s422, 1024
        $region68: #{tpu_custom_call.1} parent=51 // pred_fallthru
          _
        %s430 = sand.u32 %s32, 1
        %s431 = scalar_lea.sflag [#allocation10], %s430
        %s432 = sand.u32 %s150, 1
        %s433 = smul.addr %s432, 64
        %s434 = scalar_lea.vmem [#allocation11], %s433
        // Predicated region
        $region69: #{tpu_custom_call.1} parent=51 // pred_check
          %p435 = pneg %p163
        $region70: #{tpu_custom_call.1} parent=51 // pred_check_branch
          %437 = sbr.rel (%p435) target = $region72
        $region71: #{tpu_custom_call.1} parent=51 // pred_region
          %438 = dma.done %s431, 1024
        $region72: #{tpu_custom_call.1} parent=51 // pred_fallthru
          _
        %s439 = sand.u32 %s176, 1
        %s440 = scalar_lea.sflag [#allocation13], %s439
        %s441 = sand.u32 %s176, 1
        %s442 = smul.addr %s441, 64
        %s443 = scalar_lea.vmem [#allocation12], %s442
        // Predicated region
        $region73: #{tpu_custom_call.1} parent=51 // pred_check
          %p444 = pneg %p189
        $region74: #{tpu_custom_call.1} parent=51 // pred_check_branch
          %446 = sbr.rel (%p444) target = $region76
        $region75: #{tpu_custom_call.1} parent=51 // pred_region
          %447 = dma.done %s440, 1024
        $region76: #{tpu_custom_call.1} parent=51 // pred_fallthru
          _
        %p448 = pneg %p48
        %p449 = pneg %p45
        %p450 = pneg %p69
        %p451 = pneg %p66
        %p452 = pneg %p90
        %p453 = pneg %p87
        %p454 = pneg %p111
        %p455 = pneg %p108
        %s456 = sand.u32 %s32, 1
        %s457 = scalar_lea.sflag [#allocation10], %s456
        %s458 = sand.u32 %s124, 1
        %s459 = smul.addr %s458, 64
        %s460 = scalar_lea.vmem [#allocation9], %s459
        %p461 = pneg %p137
        %p462 = pneg %p134
        %s463 = sand.u32 %s32, 1
        %s464 = scalar_lea.sflag [#allocation10], %s463
        %s465 = sand.u32 %s150, 1
        %s466 = smul.addr %s465, 64
        %s467 = scalar_lea.vmem [#allocation11], %s466
        %p468 = pneg %p163
        %p469 = pneg %p160
        %s470 = sand.u32 %s176, 1
        %s471 = scalar_lea.sflag [#allocation13], %s470
        %s472 = sand.u32 %s176, 1
        %s473 = smul.addr %s472, 64
        %s474 = scalar_lea.vmem [#allocation12], %s473
        %p475 = pneg %p189
        %p476 = pneg %p186
        %p477 = scmp.lt.s32.totalorder %s32, 3
        %s478 = scalar_select %p477, %s32, 3
        %s479 = scalar_lea.vmem %s7, %s478
        %p480 = pneg %p215
        %p481 = pneg %p212
        %p482 = pneg %p236
        %p483 = pneg %p233
        %p484 = pneg %p257
        %p485 = pneg %p254
        %p486 = pneg %p278
        %p487 = pneg %p275
        %p488 = scmp.lt.s32.totalorder %s32, 3
        %s489 = scalar_select %p488, %s32, 3
        %s490 = scalar_lea.vmem %s7, %s489
        %v492 = vld [vmem:[#allocation3] sm:$0xff]
        %v493 = vpack.c.bf16 %v492, %v492
        %v494 = vld [vmem:[%s425] sm:$0xf]
        %v495 = vld [vmem:[%s425 + $0x4] sm:$0xf]
        %v496 = vld [vmem:[%s425 + $0x8] sm:$0xf]
        %v497 = vld [vmem:[%s425 + $0xc] sm:$0xf]
        %v498 = vld [vmem:[%s425 + $0x10] sm:$0xf]
        %v499 = vld [vmem:[%s425 + $0x14] sm:$0xf]
        %v500 = vld [vmem:[%s425 + $0x18] sm:$0xf]
        %v501 = vld [vmem:[%s425 + $0x1c] sm:$0xf]
        %v502 = vld [vmem:[%s425 + $0x20] sm:$0xf]
        %v503 = vld [vmem:[%s425 + $0x24] sm:$0xf]
        %v504 = vld [vmem:[%s425 + $0x28] sm:$0xf]
        %v505 = vld [vmem:[%s425 + $0x2c] sm:$0xf]
        %v506 = vld [vmem:[%s425 + $0x30] sm:$0xf]
        %v507 = vld [vmem:[%s425 + $0x34] sm:$0xf]
        %v508 = vld [vmem:[%s425 + $0x38] sm:$0xf]
        %v509 = vld [vmem:[%s425 + $0x3c] sm:$0xf]
        %v510 = vld [vmem:[#allocation6] sm:$0xff]
        %v511 = vpack.c.bf16 %v510, %v510
        %v512 = vld [vmem:[%s434] sm:$0xf]
        %v513 = vld [vmem:[%s434 + $0x4] sm:$0xf]
        %v514 = vld [vmem:[%s434 + $0x8] sm:$0xf]
        %v515 = vld [vmem:[%s434 + $0xc] sm:$0xf]
        %v516 = vld [vmem:[%s434 + $0x10] sm:$0xf]
        %v517 = vld [vmem:[%s434 + $0x14] sm:$0xf]
        %v518 = vld [vmem:[%s434 + $0x18] sm:$0xf]
        %v519 = vld [vmem:[%s434 + $0x1c] sm:$0xf]
        %v520 = vld [vmem:[%s434 + $0x20] sm:$0xf]
        %v521 = vld [vmem:[%s434 + $0x24] sm:$0xf]
        %v522 = vld [vmem:[%s434 + $0x28] sm:$0xf]
        %v523 = vld [vmem:[%s434 + $0x2c] sm:$0xf]
        %v524 = vld [vmem:[%s434 + $0x30] sm:$0xf]
        %v525 = vld [vmem:[%s434 + $0x34] sm:$0xf]
        %v526 = vld [vmem:[%s434 + $0x38] sm:$0xf]
        %v527 = vld [vmem:[%s434 + $0x3c] sm:$0xf]
        %v544 = vunpack.c.l.b16 %v512
        %v545 = vunpack.c.l.b16 %v513
        %v546 = vunpack.c.l.b16 %v514
        %v547 = vunpack.c.l.b16 %v515
        %v548 = vunpack.c.l.b16 %v516
        %v549 = vunpack.c.l.b16 %v517
        %v550 = vunpack.c.l.b16 %v518
        %v551 = vunpack.c.l.b16 %v519
        %v552 = vunpack.c.l.b16 %v520
        %v553 = vunpack.c.l.b16 %v521
        %v554 = vunpack.c.l.b16 %v522
        %v555 = vunpack.c.l.b16 %v523
        %v556 = vunpack.c.l.b16 %v524
        %v557 = vunpack.c.l.b16 %v525
        %v558 = vunpack.c.l.b16 %v526
        %v559 = vunpack.c.l.b16 %v527
        %v560 = vpack.c.b16 %v545, %v544
        %v561 = vpack.c.b16 %v547, %v546
        %v562 = vpack.c.b16 %v549, %v548
        %v563 = vpack.c.b16 %v551, %v550
        %v564 = vpack.c.b16 %v553, %v552
        %v565 = vpack.c.b16 %v555, %v554
        %v566 = vpack.c.b16 %v557, %v556
        %v567 = vpack.c.b16 %v559, %v558
        %576 = vmatprep.subr.bf16.mxu0 0
        %577 = vmatpush1.bf16.msra.mxu0 %v560
        %578 = vmatprep.subr.bf16.mxu0 0
        %579 = vmatpush1.bf16.msra.mxu0 %v561
        %580 = vmatprep.subr.bf16.mxu0 0
        %581 = vmatpush1.bf16.msra.mxu0 %v562
        %582 = vmatprep.subr.bf16.mxu0 0
        %583 = vmatpush1.bf16.msra.mxu0 %v563
        %584 = vmatprep.subr.bf16.mxu0 0
        %585 = vmatpush1.bf16.msra.mxu0 %v564
        %586 = vmatprep.subr.bf16.mxu0 0
        %587 = vmatpush1.bf16.msra.mxu0 %v565
        %588 = vmatprep.subr.bf16.mxu0 0
        %589 = vmatpush1.bf16.msra.mxu0 %v566
        %590 = vmatprep.subr.bf16.mxu0 0
        %591 = vmatpush1.bf16.msra.mxu0 %v567
        %592 = vmatprep.subr.bf16.mxu0 0
        %593 = vmatpush1.bf16.msra.mxu0 0
        %594 = vmatprep.subr.bf16.mxu0 0
        %595 = vmatpush1.bf16.msra.mxu0 0
        %596 = vmatprep.subr.bf16.mxu0 0
        %597 = vmatpush1.bf16.msra.mxu0 0
        %598 = vmatprep.subr.bf16.mxu0 0
        %599 = vmatpush1.bf16.msra.mxu0 0
        %600 = vmatprep.subr.bf16.mxu0 0
        %601 = vmatpush1.bf16.msra.mxu0 0
        %602 = vmatprep.subr.bf16.mxu0 0
        %603 = vmatpush1.bf16.msra.mxu0 0
        %604 = vmatprep.subr.bf16.mxu0 0
        %605 = vmatpush1.bf16.msra.mxu0 0
        %606 = vmatprep.subr.bf16.mxu0 0
        %607 = vmatpush1.bf16.msra.mxu0 0
        %608 = vmatprep.mubr.bf16.mxu0 0
        %609 = vmatmul.mubr.bf16.gmra.mrb[0].mxu0 %v511
        %v610 = vpop.f32.mrb[0].mxu0
        %v611 = vadd.f32 0.0, %v610
        %v612 = vpop.f32.mrb[0].mxu0
        %v613 = vpop.f32.mrb[0].mxu0
        %v614 = vpop.f32.mrb[0].mxu0
        %615 = vdwg.mxu0
        %v632 = vunpack.c.l.b16 %v494
        %v633 = vunpack.c.l.b16 %v495
        %v634 = vunpack.c.l.b16 %v496
        %v635 = vunpack.c.l.b16 %v497
        %v636 = vunpack.c.l.b16 %v498
        %v637 = vunpack.c.l.b16 %v499
        %v638 = vunpack.c.l.b16 %v500
        %v639 = vunpack.c.l.b16 %v501
        %v640 = vunpack.c.l.b16 %v502
        %v641 = vunpack.c.l.b16 %v503
        %v642 = vunpack.c.l.b16 %v504
        %v643 = vunpack.c.l.b16 %v505
        %v644 = vunpack.c.l.b16 %v506
        %v645 = vunpack.c.l.b16 %v507
        %v646 = vunpack.c.l.b16 %v508
        %v647 = vunpack.c.l.b16 %v509
        %v648 = vpack.c.b16 %v633, %v632
        %v649 = vpack.c.b16 %v635, %v634
        %v650 = vpack.c.b16 %v637, %v636
        %v651 = vpack.c.b16 %v639, %v638
        %v652 = vpack.c.b16 %v641, %v640
        %v653 = vpack.c.b16 %v643, %v642
        %v654 = vpack.c.b16 %v645, %v644
        %v655 = vpack.c.b16 %v647, %v646
        %664 = vmatprep.subr.bf16.mxu0 0
        %665 = vmatpush1.bf16.msra.mxu0 %v648
        %666 = vmatprep.subr.bf16.mxu0 0
        %667 = vmatpush1.bf16.msra.mxu0 %v649
        %668 = vmatprep.subr.bf16.mxu0 0
        %669 = vmatpush1.bf16.msra.mxu0 %v650
        %670 = vmatprep.subr.bf16.mxu0 0
        %671 = vmatpush1.bf16.msra.mxu0 %v651
        %672 = vmatprep.subr.bf16.mxu0 0
        %673 = vmatpush1.bf16.msra.mxu0 %v652
        %674 = vmatprep.subr.bf16.mxu0 0
        %675 = vmatpush1.bf16.msra.mxu0 %v653
        %676 = vmatprep.subr.bf16.mxu0 0
        %677 = vmatpush1.bf16.msra.mxu0 %v654
        %678 = vmatprep.subr.bf16.mxu0 0
        %679 = vmatpush1.bf16.msra.mxu0 %v655
        %680 = vmatprep.subr.bf16.mxu0 0
        %681 = vmatpush1.bf16.msra.mxu0 0
        %682 = vmatprep.subr.bf16.mxu0 0
        %683 = vmatpush1.bf16.msra.mxu0 0
        %684 = vmatprep.subr.bf16.mxu0 0
        %685 = vmatpush1.bf16.msra.mxu0 0
        %686 = vmatprep.subr.bf16.mxu0 0
        %687 = vmatpush1.bf16.msra.mxu0 0
        %688 = vmatprep.subr.bf16.mxu0 0
        %689 = vmatpush1.bf16.msra.mxu0 0
        %690 = vmatprep.subr.bf16.mxu0 0
        %691 = vmatpush1.bf16.msra.mxu0 0
        %692 = vmatprep.subr.bf16.mxu0 0
        %693 = vmatpush1.bf16.msra.mxu0 0
        %694 = vmatprep.subr.bf16.mxu0 0
        %695 = vmatpush1.bf16.msra.mxu0 0
        %696 = vmatprep.mubr.bf16.mxu0 0
        %697 = vmatmul.mubr.bf16.gmra.mrb[0].mxu0 %v493
        %v698 = vpop.f32.mrb[0].mxu0
        %v699 = vadd.f32 %v611, %v698
        %v700 = vpop.f32.mrb[0].mxu0
        %v701 = vpop.f32.mrb[0].mxu0
        %v702 = vpop.f32.mrb[0].mxu0
        %703 = vdwg.mxu0
        %v704 = vld [vmem:[#allocation8] sm:$0xff]
        %v705 = vpack.c.bf16 %v704, %v704
        %v706 = vld [vmem:[%s443] sm:$0xf]
        %v707 = vld [vmem:[%s443 + $0x4] sm:$0xf]
        %v708 = vld [vmem:[%s443 + $0x8] sm:$0xf]
        %v709 = vld [vmem:[%s443 + $0xc] sm:$0xf]
        %v710 = vld [vmem:[%s443 + $0x10] sm:$0xf]
        %v711 = vld [vmem:[%s443 + $0x14] sm:$0xf]
        %v712 = vld [vmem:[%s443 + $0x18] sm:$0xf]
        %v713 = vld [vmem:[%s443 + $0x1c] sm:$0xf]
        %v714 = vld [vmem:[%s443 + $0x20] sm:$0xf]
        %v715 = vld [vmem:[%s443 + $0x24] sm:$0xf]
        %v716 = vld [vmem:[%s443 + $0x28] sm:$0xf]
        %v717 = vld [vmem:[%s443 + $0x2c] sm:$0xf]
        %v718 = vld [vmem:[%s443 + $0x30] sm:$0xf]
        %v719 = vld [vmem:[%s443 + $0x34] sm:$0xf]
        %v720 = vld [vmem:[%s443 + $0x38] sm:$0xf]
        %v721 = vld [vmem:[%s443 + $0x3c] sm:$0xf]
        %v738 = vunpack.c.l.b16 %v706
        %v739 = vunpack.c.l.b16 %v707
        %v740 = vunpack.c.l.b16 %v708
        %v741 = vunpack.c.l.b16 %v709
        %v742 = vunpack.c.l.b16 %v710
        %v743 = vunpack.c.l.b16 %v711
        %v744 = vunpack.c.l.b16 %v712
        %v745 = vunpack.c.l.b16 %v713
        %v746 = vunpack.c.l.b16 %v714
        %v747 = vunpack.c.l.b16 %v715
        %v748 = vunpack.c.l.b16 %v716
        %v749 = vunpack.c.l.b16 %v717
        %v750 = vunpack.c.l.b16 %v718
        %v751 = vunpack.c.l.b16 %v719
        %v752 = vunpack.c.l.b16 %v720
        %v753 = vunpack.c.l.b16 %v721
        %v754 = vpack.c.b16 %v739, %v738
        %v755 = vpack.c.b16 %v741, %v740
        %v756 = vpack.c.b16 %v743, %v742
        %v757 = vpack.c.b16 %v745, %v744
        %v758 = vpack.c.b16 %v747, %v746
        %v759 = vpack.c.b16 %v749, %v748
        %v760 = vpack.c.b16 %v751, %v750
        %v761 = vpack.c.b16 %v753, %v752
        %770 = vmatprep.subr.bf16.mxu0 0
        %771 = vmatpush1.bf16.msra.mxu0 %v754
        %772 = vmatprep.subr.bf16.mxu0 0
        %773 = vmatpush1.bf16.msra.mxu0 %v755
        %774 = vmatprep.subr.bf16.mxu0 0
        %775 = vmatpush1.bf16.msra.mxu0 %v756
        %776 = vmatprep.subr.bf16.mxu0 0
        %777 = vmatpush1.bf16.msra.mxu0 %v757
        %778 = vmatprep.subr.bf16.mxu0 0
        %779 = vmatpush1.bf16.msra.mxu0 %v758
        %780 = vmatprep.subr.bf16.mxu0 0
        %781 = vmatpush1.bf16.msra.mxu0 %v759
        %782 = vmatprep.subr.bf16.mxu0 0
        %783 = vmatpush1.bf16.msra.mxu0 %v760
        %784 = vmatprep.subr.bf16.mxu0 0
        %785 = vmatpush1.bf16.msra.mxu0 %v761
        %786 = vmatprep.subr.bf16.mxu0 0
        %787 = vmatpush1.bf16.msra.mxu0 0
        %788 = vmatprep.subr.bf16.mxu0 0
        %789 = vmatpush1.bf16.msra.mxu0 0
        %790 = vmatprep.subr.bf16.mxu0 0
        %791 = vmatpush1.bf16.msra.mxu0 0
        %792 = vmatprep.subr.bf16.mxu0 0
        %793 = vmatpush1.bf16.msra.mxu0 0
        %794 = vmatprep.subr.bf16.mxu0 0
        %795 = vmatpush1.bf16.msra.mxu0 0
        %796 = vmatprep.subr.bf16.mxu0 0
        %797 = vmatpush1.bf16.msra.mxu0 0
        %798 = vmatprep.subr.bf16.mxu0 0
        %799 = vmatpush1.bf16.msra.mxu0 0
        %800 = vmatprep.subr.bf16.mxu0 0
        %801 = vmatpush1.bf16.msra.mxu0 0
        %802 = vmatprep.mubr.bf16.mxu0 0
        %803 = vmatmul.mubr.bf16.gmra.mrb[0].mxu0 %v705
        %v804 = vpop.f32.mrb[0].mxu0
        %v805 = vadd.f32 0.0, %v804
        %v806 = vpop.f32.mrb[0].mxu0
        %v807 = vpop.f32.mrb[0].mxu0
        %v808 = vpop.f32.mrb[0].mxu0
        %809 = vdwg.mxu0
        %v810 = vadd.f32 %v699, %v805
        %v811 = vld [vmem:[%s490] sm:$0x1]
        %v813 = vlaneseq
        %v814 = vshrl.u32 %v813, 7
        %v815 = vsub.s32 0, %v814
        %v816 = vrot.slane %v811, %v815
        %v818 = vadd.f32 %v810, %v816
        %s819 = smul.u32 %s32, 8
        %s820 = scalar_lea.vmem [#allocation2], %s819
        %821 = vst [vmem:[%s820] sm:$0xff] %v818
        %p822 = scmp.eq.s32.totalorder %s32, 3
        // Predicated region
        $region77: #{tpu_custom_call.1} parent=51 // pred_check
          %p823 = pneg %p822
        $region78: #{tpu_custom_call.1} parent=51 // pred_check_branch
          %825 = sbr.rel (%p823) target = $region80
        $region79: #{tpu_custom_call.1} parent=51 // pred_region
          %v826 = vld [vmem:[#allocation2] sm:$0xff]
          %v827 = vxor.u32 %v826, 2147483648
          %v828 = vmul.f32 %v827, 1.442695
          %v829 = vpow.pop %v828
          %v830 = vadd.f32 %v829, 1.0
          %v831 = vrcp.pop %v830
          %v832 = vmul.f32 1.0, %v831
          %s833 = scalar_lea.vmem [#allocation2], 8
          %v834 = vld [vmem:[%s833] sm:$0xff]
          %v835 = vxor.u32 %v834, 2147483648
          %v836 = vmul.f32 %v835, 1.442695
          %v837 = vpow.pop %v836
          %v838 = vadd.f32 %v837, 1.0
          %v839 = vrcp.pop %v838
          %v840 = vmul.f32 1.0, %v839
          %s841 = scalar_lea.vmem [#allocation2], 16
          %v842 = vld [vmem:[%s841] sm:$0xff]
          %v843 = vtanh.pop %v842
          %s844 = scalar_lea.vmem [#allocation2], 24
          %v845 = vld [vmem:[%s844] sm:$0xff]
          %v846 = vxor.u32 %v845, 2147483648
          %v847 = vmul.f32 %v846, 1.442695
          %v848 = vpow.pop %v847
          %v849 = vadd.f32 %v848, 1.0
          %v850 = vrcp.pop %v849
          %v851 = vmul.f32 1.0, %v850
          %v852 = vld [vmem:[%s3] sm:$0xff]
          %v853 = vmul.f32 %v840, %v852
          %v854 = vmul.f32 %v832, %v843
          %v855 = vadd.f32 %v853, %v854
          %v856 = vtanh.pop %v855
          %v857 = vmul.f32 %v851, %v856
          %858 = vst [vmem:[#allocation15] sm:$0xff] %v855
          %859 = vst [vmem:[#allocation14] sm:$0xff] %v857
          %v860 = vpack.c.bf16 %v857, %v857
          %861 = vst [vmem:[#allocation17] sm:$0xf] %v860
        $region80: #{tpu_custom_call.1} parent=51 // pred_fallthru
          _
        // Predicated region
        $region81: #{tpu_custom_call.1} parent=51 // pred_check
          %p862 = pneg %p233
        $region82: #{tpu_custom_call.1} parent=51 // pred_check_branch
          %864 = sbr.rel (%p862) target = $region84
        $region83: #{tpu_custom_call.1} parent=51 // pred_region
          %s866 = ssub.s32 128, 128
          %867 = vsyncadd [#allocation5], %s866
          %s869 = sshll.u32 [#allocation14], 4
          %s870 = int_to_ptr.vmem [resolvable:$true] %s869
          %872 = dma.vmem_to_hbm [thread:$0]  %s870, 128, %s8, [#allocation5]
        $region84: #{tpu_custom_call.1} parent=51 // pred_fallthru
          _
        // Predicated region
        $region85: #{tpu_custom_call.1} parent=51 // pred_check
          %p873 = pneg %p254
        $region86: #{tpu_custom_call.1} parent=51 // pred_check_branch
          %875 = sbr.rel (%p873) target = $region88
        $region87: #{tpu_custom_call.1} parent=51 // pred_region
          %s877 = ssub.s32 128, 128
          %878 = vsyncadd [#allocation16], %s877
          %s880 = sshll.u32 [#allocation15], 4
          %s881 = int_to_ptr.vmem [resolvable:$true] %s880
          %883 = dma.vmem_to_hbm [thread:$0]  %s881, 128, %s9, [#allocation16]
        $region88: #{tpu_custom_call.1} parent=51 // pred_fallthru
          _
        // Predicated region
        $region89: #{tpu_custom_call.1} parent=51 // pred_check
          %p884 = pneg %p275
        $region90: #{tpu_custom_call.1} parent=51 // pred_check_branch
          %886 = sbr.rel (%p884) target = $region92
        $region91: #{tpu_custom_call.1} parent=51 // pred_region
          %s888 = ssub.s32 64, 64
          %889 = vsyncadd [#allocation16], %s888
          %s891 = sshll.u32 [#allocation17], 4
          %s892 = int_to_ptr.vmem [resolvable:$true] %s891
          %894 = dma.vmem_to_hbm [thread:$0]  %s892, 64, %s10, [#allocation16]
        $region92: #{tpu_custom_call.1} parent=51 // pred_fallthru
          _
        // Predicated region
        $region93: #{tpu_custom_call.1} parent=51 // pred_check
          %p895 = pneg %p233
        $region94: #{tpu_custom_call.1} parent=51 // pred_check_branch
          %897 = sbr.rel (%p895) target = $region96
        $region95: #{tpu_custom_call.1} parent=51 // pred_region
          %898 = dma.done [#allocation5], 128
        $region96: #{tpu_custom_call.1} parent=51 // pred_fallthru
          _
        // Predicated region
        $region97: #{tpu_custom_call.1} parent=51 // pred_check
          %p899 = pneg %p254
        $region98: #{tpu_custom_call.1} parent=51 // pred_check_branch
          %901 = sbr.rel (%p899) target = $region100
        $region99: #{tpu_custom_call.1} parent=51 // pred_region
          %902 = dma.done [#allocation16], 128
        $region100: #{tpu_custom_call.1} parent=51 // pred_fallthru
          _
        // Predicated region
        $region101: #{tpu_custom_call.1} parent=51 // pred_check
          %p903 = pneg %p275
        $region102: #{tpu_custom_call.1} parent=51 // pred_check_branch
          %905 = sbr.rel (%p903) target = $region104
        $region103: #{tpu_custom_call.1} parent=51 // pred_region
          %906 = dma.done [#allocation16], 64
        $region104: #{tpu_custom_call.1} parent=51 // pred_fallthru
          _
      $region52: #{tpu_custom_call.1} parent=5 // pred_fallthru
        _
      %p907 = scmp.le.s32.totalorder 2, %s27
      // Predicated region
      $region105: #{tpu_custom_call.1} parent=5 // pred_check
        %p908 = pneg %p907
      $region106: #{tpu_custom_call.1} parent=5 // pred_check_branch
        %910 = sbr.rel (%p908) target = $region108
      $region107: #{tpu_custom_call.1} parent=5 // pred_region
        %s911 = ssub.s32 %s27, 2
      $region108: #{tpu_custom_call.1} parent=5 // pred_fallthru
        _
    $region6: #{tpu_custom_call.1} parent=1 // loop_footer
      %s31 = sadd.s32 1, %s27
    $region7: #{tpu_custom_call.1} parent=1 // loop_footer_branch
      %26 = sbr.rel target = $region3
    $region8: #{tpu_custom_call.1} parent=1 // loop_exit
      _
    %912 = vsyncpa [#allocation4], 1
    %s913 = scalar_lea.sflag [#allocation4], 1
    %914 = vsyncpa %s913, 1
    %915 = vsyncpa [#allocation7], 1
    %916 = vsyncpa [#allocation10], 1
    %s917 = scalar_lea.sflag [#allocation10], 1
    %918 = vsyncpa %s917, 1
    %919 = vsyncpa [#allocation13], 1
    %s920 = scalar_lea.sflag [#allocation13], 1
    %921 = vsyncpa %s920, 1
    %922 = vsyncpa [#allocation5], 1
    %s923 = scalar_lea.sflag [#allocation5], 1
    %924 = vsyncpa %s923, 1
    %925 = vsyncpa [#allocation16], 1

</llo_original>
